<compile_context>
chip_gen: v6e
topology: v6e:2x2x1
jax: 0.10.0
libtpu: 0.0.40
codegen_flags: <defaults>
</compile_context>

<pallas_src>
import functools
import numpy as np
import jax
import jax.numpy as jnp
from jax.experimental import pallas as pl
from jax.experimental.pallas import tpu as pltpu


# ----------------------------------------------------------------------------
# Helpers
# ----------------------------------------------------------------------------
def _round_up(x: int, m: int) -> int:
    return ((x + m - 1) // m) * m


def _sublane_multiple(dtype) -> int:
    # f32 -> 8, bf16 -> 16, int8/fp8 -> 32 (second-minor packing).
    itemsize = jnp.dtype(dtype).itemsize
    return max(8, 32 // max(itemsize, 1))


def _vmem_limit_bytes() -> int:
    """Generation-aware scoped-VMEM budget (v5e/v6e: 128 MiB phys, v7x: 64 MiB)."""
    cap = None
    try:
        info = pltpu.get_tpu_info()
        cap = getattr(info, "vmem_capacity_bytes", None)
    except Exception:
        cap = None
    if cap is None:
        cap = 64 * 1024 * 1024          # conservative fallback (v7x-sized)
    if cap >= 100 * 1024 * 1024:        # v5e / v6e (128 MiB physical VMEM)
        return 96 * 1024 * 1024
    return 48 * 1024 * 1024             # v7x (64 MiB physical VMEM)


def _select_tiles(d_out: int, d_in: int, op_dtype, vmem_limit: int):
    """Pick (tm_cap, tn, tk): lane-dense, as large as the VMEM budget allows."""
    item = jnp.dtype(op_dtype).itemsize
    out_item = 4  # conservative: f32 output / f32 accumulator
    big_vmem = vmem_limit >= 64 * 1024 * 1024

    tm_cap = 512
    tn = min(512, _round_up(d_out, 128))
    tk_cap = 4096 if big_vmem else 2048          # halve K tile on v7x-class VMEM
    tk = min(tk_cap, _round_up(d_in, 128))

    budget = int(vmem_limit * 0.75)              # headroom for compiler scratch

    def working_set(tm, tn_, tk_):
        ws = 2 * tm * tk_ * item                 # x tile, double-buffered
        ws += 2 * tk_ * tn_ * item               # W tile, double-buffered
        ws += 2 * tm * tn_ * out_item            # out tile, double-buffered
        ws += tm * tn_ * 4                       # f32 acc scratch (worst case)
        return ws

    # Shrink tk, then tn, then tm until the pipeline working set fits.
    while working_set(tm_cap, tn, tk) > budget and tk % 256 == 0 and tk > 512:
        tk //= 2
    while working_set(tm_cap, tn, tk) > budget and tn % 256 == 0 and tn > 256:
        tn //= 2
    while working_set(tm_cap, tn, tk) > budget and tm_cap > 128:
        tm_cap //= 2
    return tm_cap, tn, tk


# ----------------------------------------------------------------------------
# Kernels
# ----------------------------------------------------------------------------
def _linear_kernel_f32_out(x_ref, w_ref, o_ref):
    # x_ref: (tm, tk)  w_ref: (tk, tn)  o_ref: (tm, tn) f32.
    # The output block is VMEM-resident across the K grid axis (same (i, j)
    # block index), so accumulate directly into it — no scratch, no finalize.
    @pl.when(pl.program_id(2) == 0)
    def _init():
        o_ref[...] = jnp.zeros_like(o_ref)

    o_ref[...] += jnp.dot(x_ref[...], w_ref[...],
                          preferred_element_type=jnp.float32)


def _linear_kernel_acc(x_ref, w_ref, o_ref, acc_ref):
    # Non-f32 output: keep an f32 VMEM accumulator, cast once at the end.
    @pl.when(pl.program_id(2) == 0)
    def _init():
        acc_ref[...] = jnp.zeros_like(acc_ref)

    acc_ref[...] += jnp.dot(x_ref[...], w_ref[...],
                            preferred_element_type=jnp.float32)

    @pl.when(pl.program_id(2) == pl.num_programs(2) - 1)
    def _finalize():
        o_ref[...] = acc_ref[...].astype(o_ref.dtype)


# ----------------------------------------------------------------------------
# Jitted matmul wrapper (weights arrive pre-transposed & pre-padded)
# ----------------------------------------------------------------------------
@functools.partial(
    jax.jit,
    static_argnames=("d_out", "tm", "tn", "tk", "vmem_limit", "out_dtype"))
def _linear_matmul(x_flat, w_prep, *, d_out, tm, tn, tk, vmem_limit, out_dtype):
    m, d_in = x_flat.shape
    k_p, n_p = w_prep.shape
    m_p = _round_up(m, tm)

    # Per-call activation padding only (weights were padded once at prep time).
    # K zero-padding is load-bearing: padded K contributes zeros to the dot.
    if (m_p, k_p) != (m, d_in):
        x_flat = jnp.pad(x_flat, ((0, m_p - m), (0, k_p - d_in)))

    grid = (m_p // tm, n_p // tn, k_p // tk)

    out_dt = jnp.dtype(out_dtype)
    if out_dt == jnp.dtype(jnp.float32):
        kernel = _linear_kernel_f32_out
        scratch_shapes = []
    else:
        kernel = _linear_kernel_acc
        scratch_shapes = [pltpu.VMEM((tm, tn), jnp.float32)]

    item = jnp.dtype(x_flat.dtype).itemsize
    cost = pl.CostEstimate(
        flops=2 * m_p * n_p * k_p,
        transcendentals=0,
        bytes_accessed=(m_p * k_p + k_p * n_p) * item + m_p * n_p * out_dt.itemsize,
    )

    out_pad = pl.pallas_call(
        kernel,
        out_shape=jax.ShapeDtypeStruct((m_p, n_p), out_dt),
        grid_spec=pltpu.PrefetchScalarGridSpec(
            num_scalar_prefetch=0,
            grid=grid,
            in_specs=[
                pl.BlockSpec((tm, tk), lambda i, j, k: (i, k)),   # x  (M, K)
                pl.BlockSpec((tk, tn), lambda i, j, k: (k, j)),   # Wᵀ (K, N)
            ],
            out_specs=pl.BlockSpec((tm, tn), lambda i, j, k: (i, j)),
            scratch_shapes=scratch_shapes,
        ),
        compiler_params=pltpu.CompilerParams(
            dimension_semantics=("parallel", "parallel", "arbitrary"),
            vmem_limit_bytes=vmem_limit,
        ),
        cost_estimate=cost,
    )(x_flat, w_prep)

    return out_pad[:m, :d_out]


# ----------------------------------------------------------------------------
# Public API
# ----------------------------------------------------------------------------
def make_linear(weights: jax.Array, *, compute_dtype=None):
    """Builds a forward(x) closure for y = x @ weights.T.

    Weight transpose / padding / (optional) dtype cast happen ONCE here, not
    per forward call.  `compute_dtype=jnp.bfloat16` feeds the MXU bf16
    operands (f32 accumulation) — accuracy-affecting, opt-in.
    """
    d_out, d_in = weights.shape
    op_dtype = jnp.dtype(compute_dtype) if compute_dtype is not None \
        else jnp.dtype(weights.dtype)

    vmem_limit = _vmem_limit_bytes()
    tm_cap, tn, tk = _select_tiles(d_out, d_in, op_dtype, vmem_limit)

    k_p = _round_up(d_in, tk)
    n_p = _round_up(d_out, tn)

    # One-time weight prep: (d_out, d_in) -> (d_in, d_out), zero-pad to tiles.
    w_t = jnp.asarray(weights, dtype=op_dtype).T
    if (k_p, n_p) != (d_in, d_out):
        w_t = jnp.pad(w_t, ((0, k_p - d_in), (0, n_p - d_out)))
    w_prep = jax.block_until_ready(w_t)

    sub = _sublane_multiple(op_dtype)

    def forward(x: jax.Array) -> jax.Array:
        assert x.shape[-1] == d_in, "feature dim mismatch"
        lead_shape = x.shape[:-1]
        out_dtype = jnp.dtype(x.dtype)
        x_flat = jnp.asarray(x, dtype=op_dtype).reshape(-1, d_in)
        m = x_flat.shape[0]

        tm = min(tm_cap, _round_up(m, sub))

        # Megacore: if the parallel (M, N) grid is a single step, split N so
        # both TensorCores get work (only when the half stays lane-dense).
        tn_eff = tn
        if (_round_up(m, tm) // tm) * (n_p // tn_eff) == 1 and tn_eff % 256 == 0:
            tn_eff //= 2

        y = _linear_matmul(x_flat, w_prep, d_out=d_out, tm=tm, tn=tn_eff,
                           tk=tk, vmem_limit=vmem_limit, out_dtype=out_dtype)
        return y.reshape(*lead_shape, d_out)

    return forward


def linear_forward(x: jax.Array, weights: jax.Array) -> jax.Array:
    """One-shot convenience wrapper.  For repeated calls with the same weights,
    prefer make_linear(weights) so weight prep is hoisted out of the hot path."""
    return make_linear(weights)(x)


def init_linear_weights(key, in_features: int, out_features: int,
                        dtype=jnp.float32) -> jax.Array:
    """Mirrors the PyTorch module's init:
       trunc_normal_(std=1.0, a=-3*std, b=3*std) with std = sqrt(2/(in+out))."""
    std = np.sqrt(2.0 / (in_features + out_features))
    lo, hi = -3.0 * std, 3.0 * std
    w = jax.random.truncated_normal(
        key, lower=lo, upper=hi, shape=(out_features, in_features),
        dtype=jnp.float32,
    )
    return w.astype(dtype)


# ----------------------------------------------------------------------------
# Self-test
# ----------------------------------------------------------------------------
if __name__ == "__main__":
    key = jax.random.PRNGKey(0)
    k_w, k_x, k_w2, k_x2, k_w3, k_x3 = jax.random.split(key, 6)

    # Case 1: small, module-like shapes (f32, direct-accumulate kernel path).
    batch, seq, d_in, d_out = 2, 8, 32, 64
    weights = init_linear_weights(k_w, d_in, d_out, dtype=jnp.float32)
    x = jax.random.normal(k_x, (batch, seq, d_in), dtype=jnp.float32)

    fwd = make_linear(weights)
    y = jax.block_until_ready(fwd(x))
    y_ref = jnp.einsum("oi,bsi->bso", weights, x)
    assert y.shape == (batch, seq, d_out)
    np.testing.assert_allclose(np.asarray(y), np.asarray(y_ref),
                               rtol=1e-5, atol=1e-5)

    # Case 2: ragged shapes exercising M/N/K padding (f32 path).
    b2, s2, din2, dout2 = 3, 7, 96, 200
    w2 = init_linear_weights(k_w2, din2, dout2, dtype=jnp.float32)
    x2 = jax.random.normal(k_x2, (b2, s2, din2), dtype=jnp.float32)

    y2 = jax.block_until_ready(make_linear(w2)(x2))
    y2_ref = jnp.einsum("oi,bsi->bso", w2, x2)
    assert y2.shape == (b2, s2, dout2)
    np.testing.assert_allclose(np.asarray(y2), np.asarray(y2_ref),
                               rtol=1e-5, atol=1e-5)

    # Case 3: bf16 operands (bf16-native MXU path, f32 acc scratch kernel).
    b3, s3, din3, dout3 = 2, 8, 64, 128
    w3 = init_linear_weights(k_w3, din3, dout3, dtype=jnp.bfloat16)
    x3 = jax.random.normal(k_x3, (b3, s3, din3), dtype=jnp.float32).astype(jnp.bfloat16)

    y3 = jax.block_until_ready(make_linear(w3, compute_dtype=jnp.bfloat16)(x3))
    y3_ref = jnp.einsum("oi,bsi->bso", w3.astype(jnp.float32),
                        x3.astype(jnp.float32)).astype(jnp.bfloat16)
    assert y3.shape == (b3, s3, dout3)
    np.testing.assert_allclose(np.asarray(y3, dtype=np.float32),
                               np.asarray(y3_ref, dtype=np.float32),
                               rtol=2e-2, atol=2e-2)

    print("KERNEL_OK")
</pallas_src>

<mosaic_0001>
module attributes {stable_mosaic.version = 11 : i64} {
  func.func @_linear_kernel_f32_out(%arg0: i32, %arg1: i32, %arg2: i32, %arg3: memref<16x128xf32, #tpu.memory_space<vmem>>, %arg4: memref<128x128xf32, #tpu.memory_space<vmem>>, %arg5: memref<16x128xf32, #tpu.memory_space<vmem>>) attributes {dimension_semantics = [#tpu.dimension_semantics<parallel>, #tpu.dimension_semantics<parallel>, #tpu.dimension_semantics<arbitrary>], iteration_bounds = array<i64: 1, 1, 1>, scalar_prefetch = 0 : i64, scratch_operands = 0 : i64, tpu.core_type = #tpu.core_type<tc>, window_params = [{transform_indices = @transform_0, window_bounds = array<i64: 16, 128>}, {transform_indices = @transform_1, window_bounds = array<i64: 128, 128>}, {transform_indices = @transform_2, window_bounds = array<i64: 16, 128>}]} {
    %c0_i32 = arith.constant 0 : i32
    %0 = arith.cmpi eq, %arg2, %c0_i32 : i32
    %1 = arith.extui %0 : i1 to i32
    %c0_i32_0 = arith.constant 0 : i32
    %2 = arith.cmpi ne, %1, %c0_i32_0 : i32
    scf.if %2 {
      %cst_8 = arith.constant 0.000000e+00 : f32
      %9 = vector.broadcast %cst_8 : f32 to vector<16x128xf32>
      %c0_9 = arith.constant 0 : index
      %c0_10 = arith.constant 0 : index
      %10 = vector.load %arg5[%c0_9, %c0_10] : memref<16x128xf32, #tpu.memory_space<vmem>>, vector<16x128xf32>
      tpu.vector_store %arg5[%c0_9, %c0_10], %9 {strides = array<i32>} : memref<16x128xf32, #tpu.memory_space<vmem>>, vector<16x128xf32>,
    } else {
    }
    %c0 = arith.constant 0 : index
    %c0_1 = arith.constant 0 : index
    %3 = vector.load %arg5[%c0, %c0_1] : memref<16x128xf32, #tpu.memory_space<vmem>>, vector<16x128xf32>
    %c0_2 = arith.constant 0 : index
    %c0_3 = arith.constant 0 : index
    %4 = vector.load %arg3[%c0_2, %c0_3] : memref<16x128xf32, #tpu.memory_space<vmem>>, vector<16x128xf32>
    %c0_4 = arith.constant 0 : index
    %c0_5 = arith.constant 0 : index
    %5 = vector.load %arg4[%c0_4, %c0_5] : memref<128x128xf32, #tpu.memory_space<vmem>>, vector<128x128xf32>
    %cst = arith.constant dense<0.000000e+00> : vector<16x128xf32>
    %6 = tpu.matmul %4, %5, %cst {dimension_numbers = #tpu.dot_dimension_numbers<[1], [0], [0], [1], [0, 0, 1, 1], [], []>} : vector<16x128xf32>, vector<128x128xf32>, vector<16x128xf32> -> vector<16x128xf32>
    %7 = arith.addf %3, %6 : vector<16x128xf32>
    %c0_6 = arith.constant 0 : index
    %c0_7 = arith.constant 0 : index
    %8 = vector.load %arg5[%c0_6, %c0_7] : memref<16x128xf32, #tpu.memory_space<vmem>>, vector<16x128xf32>
    tpu.vector_store %arg5[%c0_6, %c0_7], %7 {strides = array<i32>} : memref<16x128xf32, #tpu.memory_space<vmem>>, vector<16x128xf32>,
    return
  }
  func.func @transform_0(%arg0: i32, %arg1: i32, %arg2: i32) -> (i32, i32) {
    %c0_i32 = arith.constant 0 : i32
    return %arg0, %arg2 : i32, i32
  }
  func.func @transform_1(%arg0: i32, %arg1: i32, %arg2: i32) -> (i32, i32) {
    %c0_i32 = arith.constant 0 : i32
    return %arg2, %arg1 : i32, i32
  }
  func.func @transform_2(%arg0: i32, %arg1: i32, %arg2: i32) -> (i32, i32) {
    %c0_i32 = arith.constant 0 : i32
    return %arg0, %arg1 : i32, i32
  }
}

</mosaic_0001>

<llo_original>
// kernel: _linear_matmul.1
$region0: #{_linear_matmul.1}
  #allocation0 [shape = 'u32[]', space=smem, size = 0x4, offset = 0x4, fixed_abs, tag = 'smem constant byte address 0x4 - core index']
  #allocation1 [shape = 'u32[144,128]{1,0:T(1,128)}', space=vmem, size = 0x12000, scoped, tag = 'internal scratch']
  %s0 = inlined_call_operand.vmem [shape: f32[16,128], index: 0, kind: input, shape index: {}]
  %s1 = inlined_call_operand.hbm [shape: f32[128,128], index: 1, kind: input, shape index: {}]
  %s2 = inlined_call_operand.hbm [shape: f32[16,128], index: 2, kind: output, shape index: {}]
  %s3 = sld [smem:[#allocation0]]
  $region26: #{_linear_matmul.1} parent=0
    _
  %s5 = ssub.s32 1, %s3
  %s6 = scalar_select 0, %s5, %s3
  $region1: #{_linear_matmul.1} parent=0
    #allocation2 [shape = 'u8[65536]{0}', space=vmem, size = 0x10000, scoped, tag = 'input window, operand 1, single buffered']
    #allocation3 [shape = 's32[1]{0}', space=sflag, size = 0x4, scoped, tag = 'scoped memory for _linear_matmul.1']
    #allocation4 [shape = 's32[1]{0}', space=sflag, size = 0x4, scoped, tag = 'scoped memory for _linear_matmul.1']
    #allocation5 [shape = 'u8[8192]{0}', space=vmem, size = 0x2000, scoped, tag = 'output window, operand 0, single buffered']
    %7 = vsyncpa [#allocation3], 0
    %8 = vsyncpa [#allocation4], 0
    // Predicated region
    $region2: #{_linear_matmul.1} parent=1 // pred_check
      _
    $region3: #{_linear_matmul.1} parent=1 // pred_check_branch
      %10 = sbr.rel (0) target = $region5
    $region4: #{_linear_matmul.1} parent=1 // pred_region
      _
    $region5: #{_linear_matmul.1} parent=1 // pred_fallthru
      _
    // Predicated region
    $region6: #{_linear_matmul.1} parent=1 // pred_check
      _
    $region7: #{_linear_matmul.1} parent=1 // pred_check_branch
      %12 = sbr.rel (0) target = $region9
    $region8: #{_linear_matmul.1} parent=1 // pred_region
      %s14 = ssub.s32 2048, 2048
      %15 = vsyncadd [#allocation3], %s14
      %s16 = sshll.u32 [#allocation2], 4
      %s17 = int_to_ptr.vmem [resolvable:$true] %s16
      %22 = dma.hbm_to_vmem [thread:$0]  %s1, 2048, %s17, [#allocation3], 128, 128, 8
    $region9: #{_linear_matmul.1} parent=1 // pred_fallthru
      _
    // Predicated region
    $region10: #{_linear_matmul.1} parent=1 // pred_check
      _
    $region11: #{_linear_matmul.1} parent=1 // pred_check_branch
      %24 = sbr.rel (0) target = $region13
    $region12: #{_linear_matmul.1} parent=1 // pred_region
      %25 = dma.done [#allocation3], 2048
    $region13: #{_linear_matmul.1} parent=1 // pred_fallthru
      _
    %p26 = scmp.eq.s32.totalorder 0, 0
    // Predicated region
    $region14: #{_linear_matmul.1} parent=1 // pred_check
      %p27 = pneg %p26
    $region15: #{_linear_matmul.1} parent=1 // pred_check_branch
      %29 = sbr.rel (%p27) target = $region17
    $region16: #{_linear_matmul.1} parent=1 // pred_region
      %30 = vst [vmem:[#allocation5] sm:$0xff] 0.0
      %31 = vst [vmem:[#allocation5 + $0x8] sm:$0xff] 0.0
    $region17: #{_linear_matmul.1} parent=1 // pred_fallthru
      _
    %v32 = vld [vmem:[#allocation5] sm:$0xff]
    %v33 = vld [vmem:[#allocation5 + $0x8] sm:$0xff]
    %v34 = vld [vmem:[%s0] sm:$0xff]
    %v35 = vld [vmem:[%s0 + $0x8] sm:$0xff]
    %v36 = vld [vmem:[#allocation2] sm:$0xff]
    %v37 = vld [vmem:[#allocation2 + $0x8] sm:$0xff]
    %v38 = vld [vmem:[#allocation2 + $0x10] sm:$0xff]
    %v39 = vld [vmem:[#allocation2 + $0x18] sm:$0xff]
    %v40 = vld [vmem:[#allocation2 + $0x20] sm:$0xff]
    %v41 = vld [vmem:[#allocation2 + $0x28] sm:$0xff]
    %v42 = vld [vmem:[#allocation2 + $0x30] sm:$0xff]
    %v43 = vld [vmem:[#allocation2 + $0x38] sm:$0xff]
    %v44 = vld [vmem:[#allocation2 + $0x40] sm:$0xff]
    %v45 = vld [vmem:[#allocation2 + $0x48] sm:$0xff]
    %v46 = vld [vmem:[#allocation2 + $0x50] sm:$0xff]
    %v47 = vld [vmem:[#allocation2 + $0x58] sm:$0xff]
    %v48 = vld [vmem:[#allocation2 + $0x60] sm:$0xff]
    %v49 = vld [vmem:[#allocation2 + $0x68] sm:$0xff]
    %v50 = vld [vmem:[#allocation2 + $0x70] sm:$0xff]
    %v51 = vld [vmem:[#allocation2 + $0x78] sm:$0xff]
    %52 = vmatprep.subr.mxu0 0.0
    %53 = vmatpush1.msra.mxu0 %v51
    %54 = vmatprep.subr.mxu0 0.0
    %55 = vmatpush1.msra.mxu0 %v50
    %56 = vmatprep.subr.mxu0 0.0
    %57 = vmatpush1.msra.mxu0 %v49
    %58 = vmatprep.subr.mxu0 0.0
    %59 = vmatpush1.msra.mxu0 %v48
    %60 = vmatprep.subr.mxu0 0.0
    %61 = vmatpush1.msra.mxu0 %v47
    %62 = vmatprep.subr.mxu0 0.0
    %63 = vmatpush1.msra.mxu0 %v46
    %64 = vmatprep.subr.mxu0 0.0
    %65 = vmatpush1.msra.mxu0 %v45
    %66 = vmatprep.subr.mxu0 0.0
    %67 = vmatpush1.msra.mxu0 %v44
    %68 = vmatprep.subr.mxu0 0.0
    %69 = vmatpush1.msra.mxu0 %v43
    %70 = vmatprep.subr.mxu0 0.0
    %71 = vmatpush1.msra.mxu0 %v42
    %72 = vmatprep.subr.mxu0 0.0
    %73 = vmatpush1.msra.mxu0 %v41
    %74 = vmatprep.subr.mxu0 0.0
    %75 = vmatpush1.msra.mxu0 %v40
    %76 = vmatprep.subr.mxu0 0.0
    %77 = vmatpush1.msra.mxu0 %v39
    %78 = vmatprep.subr.mxu0 0.0
    %79 = vmatpush1.msra.mxu0 %v38
    %80 = vmatprep.subr.mxu0 0.0
    %81 = vmatpush1.msra.mxu0 %v37
    %82 = vmatprep.subr.mxu0 0.0
    %83 = vmatpush1.msra.mxu0 %v36
    %84 = vmatprep.subr.mxu0 0.0
    %85 = vmatpush2.msra.mxu0 0.0
    %86 = vmatprep.subr.mxu0 0.0
    %87 = vmatpush2.msra.mxu0 0.0
    %88 = vmatprep.subr.mxu0 0.0
    %89 = vmatpush2.msra.mxu0 0.0
    %90 = vmatprep.subr.mxu0 0.0
    %91 = vmatpush2.msra.mxu0 0.0
    %92 = vmatprep.subr.mxu0 0.0
    %93 = vmatpush2.msra.mxu0 0.0
    %94 = vmatprep.subr.mxu0 0.0
    %95 = vmatpush2.msra.mxu0 0.0
    %96 = vmatprep.subr.mxu0 0.0
    %97 = vmatpush2.msra.mxu0 0.0
    %98 = vmatprep.subr.mxu0 0.0
    %99 = vmatpush2.msra.mxu0 0.0
    %100 = vmatprep.subr.mxu0 0.0
    %101 = vmatpush2.msra.mxu0 0.0
    %102 = vmatprep.subr.mxu0 0.0
    %103 = vmatpush2.msra.mxu0 0.0
    %104 = vmatprep.subr.mxu0 0.0
    %105 = vmatpush2.msra.mxu0 0.0
    %106 = vmatprep.subr.mxu0 0.0
    %107 = vmatpush2.msra.mxu0 0.0
    %108 = vmatprep.subr.mxu0 0.0
    %109 = vmatpush2.msra.mxu0 0.0
    %110 = vmatprep.subr.mxu0 0.0
    %111 = vmatpush2.msra.mxu0 0.0
    %112 = vmatprep.subr.mxu0 0.0
    %113 = vmatpush2.msra.mxu0 0.0
    %114 = vmatprep.subr.mxu0 0.0
    %115 = vmatpush2.msra.mxu0 0.0
    %116 = vmatprep.mubr.f32.mxu0 0.0
    %117 = vmatmul.mubr.f32.gmra.mxu0 %v34
    %v118 = vpop.f32.mrf.mxu0
    %v119 = vadd.f32 0.0, %v118
    %v120 = vpop.f32.mrf.mxu0
    %121 = vmatprep.mubr.f32.mxu0 0.0
    %122 = vmatmul.mubr.f32.gmra.mxu0 %v35
    %v123 = vpop.f32.mrf.mxu0
    %v124 = vadd.f32 0.0, %v123
    %v125 = vpop.f32.mrf.mxu0
    %126 = vdwg.mxu0
    %v127 = vadd.f32 %v32, %v119
    %v128 = vadd.f32 %v33, %v124
    %129 = vst [vmem:[#allocation5] sm:$0xff] %v127
    %130 = vst [vmem:[#allocation5 + $0x8] sm:$0xff] %v128
    // Predicated region
    $region18: #{_linear_matmul.1} parent=1 // pred_check
      _
    $region19: #{_linear_matmul.1} parent=1 // pred_check_branch
      %132 = sbr.rel (0) target = $region21
    $region20: #{_linear_matmul.1} parent=1 // pred_region
      %s134 = ssub.s32 256, 256
      %135 = vsyncadd [#allocation4], %s134
      %s136 = sshll.u32 [#allocation5], 4
      %s137 = int_to_ptr.vmem [resolvable:$true] %s136
      %142 = dma.vmem_to_hbm [thread:$0]  %s137, 256, %s2, [#allocation4], 128, 128, 8
    $region21: #{_linear_matmul.1} parent=1 // pred_fallthru
      _
    // Predicated region
    $region22: #{_linear_matmul.1} parent=1 // pred_check
      _
    $region23: #{_linear_matmul.1} parent=1 // pred_check_branch
      %144 = sbr.rel (0) target = $region25
    $region24: #{_linear_matmul.1} parent=1 // pred_region
      %145 = dma.done [#allocation4], 256
    $region25: #{_linear_matmul.1} parent=1 // pred_fallthru
      _
    %146 = vsyncpa [#allocation3], 1
    %147 = vsyncpa [#allocation4], 1

</llo_original>
